<compile_context>
chip_gen: v7x
topology: tpu7x:2x2x1
jax: 0.10.0
libtpu: 0.0.40
codegen_flags: <defaults>
</compile_context>

<pallas_src>
import jax
import jax.numpy as jnp
from jax import lax
from jax.experimental import pallas as pl
from jax.experimental.pallas import tpu as pltpu


def _coordboost_kernel(x_ref,
                       wc_ref, bc_ref,
                       w1_ref, b1_ref,
                       w2_ref, b2_ref,
                       w3t_ref, b3_ref,
                       o_ref):
    x = x_ref[...]                                   # (tm, 2) f32

    # fc_coord: Linear(2, Hp) + Tanh, done as a VPU outer product
    # (a K=2 contraction is too skinny to be worth an MXU pass).
    h = jnp.tanh(x[:, 0:1] * wc_ref[0:1, :]
                 + x[:, 1:2] * wc_ref[1:2, :]
                 + bc_ref[...])                      # (tm, Hp)

    # layers[0]: Linear(Hp, Hp) + Tanh
    h = jnp.tanh(
        jnp.dot(h, w1_ref[...], preferred_element_type=jnp.float32)
        + b1_ref[...])
    # layers[2]: Linear(Hp, Hp) + Tanh
    h = jnp.tanh(
        jnp.dot(h, w2_ref[...], preferred_element_type=jnp.float32)
        + b2_ref[...])

    # layers[4]: Linear(Hp, n_out), computed transposed so the per-row results
    # land on the lane axis (lane-dense output block, unmasked stores):
    #   y^T[o, r] = sum_k w3t[o, k] * h[r, k]    (contract both last dims)
    yt = lax.dot_general(w3t_ref[...], h,
                         (((1,), (1,)), ((), ())),
                         preferred_element_type=jnp.float32) + b3_ref[...]
    o_ref[...] = yt.astype(o_ref.dtype)              # (n_out_pad, tm)


def _pick_row_tiling(m, tm_max):
    """Pick (m_pad, tm): tm a multiple of 128 that divides m_pad, minimal pad."""
    m128 = pl.cdiv(m, 128) * 128
    q = m128 // 128
    dmax = max(1, tm_max // 128)
    best = 1
    for d in range(1, min(q, dmax) + 1):   # tiny loop (<= tm_max // 128 iters)
        if q % d == 0:
            best = d
    tm = 128 * best
    m_pad = m128
    # If M is large but has no decent 128-block divisor, pad a bit more so each
    # grid step amortizes the ~0.35 us per-step overhead.
    if tm < 512 and m128 >= 8 * 1024:
        tm = 128 * dmax
        m_pad = pl.cdiv(m128, tm) * tm
    # Make sure there are >= 2 row blocks so both TensorCores get work on v7x.
    if m_pad // tm == 1 and tm >= 256:
        tm //= 2
    return m_pad, tm


def _prepare_params(params, hp, n_out_pad):
    """Zero-pad / transpose parameters into the kernel layout (exact: pads are 0)."""
    wc, bc, w1, b1, w2, b2, w3, b3 = params
    hidden = wc.shape[1]
    n_out = w3.shape[1]
    f32 = jnp.float32

    def pad2(w, rows, cols):
        w = w.astype(f32)
        return jnp.pad(w, ((0, rows - w.shape[0]), (0, cols - w.shape[1])))

    wcp = pad2(wc, 2, hp)                              # (2, Hp)
    w1p = pad2(w1, hp, hp)                             # (Hp, Hp)
    w2p = pad2(w2, hp, hp)                             # (Hp, Hp)
    w3tp = pad2(w3, hp, n_out).T                       # (n_out, Hp)
    w3tp = jnp.pad(w3tp, ((0, n_out_pad - n_out), (0, 0)))   # (NOp, Hp)

    bcp = jnp.pad(bc.astype(f32), (0, hp - hidden)).reshape(1, hp)
    b1p = jnp.pad(b1.astype(f32), (0, hp - hidden)).reshape(1, hp)
    b2p = jnp.pad(b2.astype(f32), (0, hp - hidden)).reshape(1, hp)
    b3p = jnp.pad(b3.astype(f32), (0, n_out_pad - n_out)).reshape(n_out_pad, 1)
    return wcp, bcp, w1p, b1p, w2p, b2p, w3tp, b3p


def coordboost_forward(coord, z, params, *, tm_max=1024):
    """coord: (sq_len, b, n, 2) f32; z is accepted but unused (dead latent branch)."""
    del z  # latent branch is dead code in the original forward
    sq_len, b, n, two = coord.shape
    assert two == 2
    wc, w3 = params[0], params[6]
    hidden = wc.shape[1]
    n_out = w3.shape[1]
    hp = pl.cdiv(hidden, 128) * 128          # lane-padded hidden width
    n_out_pad = pl.cdiv(n_out, 8) * 8        # sublane-padded output width

    M = sq_len * b * n
    x = coord.reshape(M, 2).astype(jnp.float32)    # free reshape (contiguous)

    m_pad, tm = _pick_row_tiling(M, tm_max)
    if m_pad != M:
        # Only when M is not a multiple of 128 (or has no usable tile divisor);
        # padded rows compute garbage that is sliced off below.
        x = jnp.pad(x, ((0, m_pad - M), (0, 0)))

    wcp, bcp, w1p, b1p, w2p, b2p, w3tp, b3p = _prepare_params(
        params, hp, n_out_pad)

    rows = lambda i: (i, 0)     # activations: tile along rows (sublane axis)
    lanes = lambda i: (0, i)    # transposed output: tile along lanes
    full = lambda i: (0, 0)     # weights / biases: same full block every step

    yt = pl.pallas_call(
        _coordboost_kernel,
        out_shape=jax.ShapeDtypeStruct((n_out_pad, m_pad), jnp.float32),
        grid=(m_pad // tm,),
        in_specs=[
            pl.BlockSpec((tm, 2), rows),          # x
            pl.BlockSpec((2, hp), full),          # wc
            pl.BlockSpec((1, hp), full),          # bc
            pl.BlockSpec((hp, hp), full),         # w1
            pl.BlockSpec((1, hp), full),          # b1
            pl.BlockSpec((hp, hp), full),         # w2
            pl.BlockSpec((1, hp), full),          # b2
            pl.BlockSpec((n_out_pad, hp), full),  # w3^T (padded)
            pl.BlockSpec((n_out_pad, 1), full),   # b3 (column)
        ],
        out_specs=pl.BlockSpec((n_out_pad, tm), lanes),
        compiler_params=pltpu.CompilerParams(
            dimension_semantics=("parallel",)),
    )(x, wcp, bcp, w1p, b1p, w2p, b2p, w3tp, b3p)

    # (n_out_pad, m_pad) -> (M, n_out) -> (sq_len, b, n*n_out).
    # For n_out == 1 the transpose is a free reshape.
    y = yt[:n_out, :M].T
    return y.reshape(sq_len, b, n * n_out)


def init_params(key, latent_dim, hidden_dim, n_out=1):
    """Deterministic init matching the PyTorch module's parameter shapes.

    Weights stored as (in, out) = PyTorch weight.T; uniform(-1/sqrt(fan_in), ...).
    fc_latent exists in the module but is dead code in forward, so it is omitted.
    """
    del latent_dim  # fc_latent never participates in the forward pass
    ks = jax.random.split(key, 8)

    def lin(kw, kb, fan_in, fan_out):
        bound = 1.0 / jnp.sqrt(fan_in)
        w = jax.random.uniform(kw, (fan_in, fan_out), jnp.float32, -bound, bound)
        b = jax.random.uniform(kb, (fan_out,), jnp.float32, -bound, bound)
        return w, b

    wc, bc = lin(ks[0], ks[1], 2, hidden_dim)
    w1, b1 = lin(ks[2], ks[3], hidden_dim, hidden_dim)
    w2, b2 = lin(ks[4], ks[5], hidden_dim, hidden_dim)
    w3, b3 = lin(ks[6], ks[7], hidden_dim, n_out)
    return (wc, bc, w1, b1, w2, b2, w3, b3)


def reference_forward(coord, z, params):
    """Pure-JAX reference mirroring the PyTorch forward."""
    del z
    sq_len, b, n, _ = coord.shape
    wc, bc, w1, b1, w2, b2, w3, b3 = params
    x = coord.reshape(-1, 2)
    h = jnp.tanh(x @ wc + bc)
    h = jnp.tanh(h @ w1 + b1)
    h = jnp.tanh(h @ w2 + b2)
    y = h @ w3 + b3
    return y.reshape(sq_len, b, -1)


if __name__ == "__main__":
    sq_len, batch, n_pts = 8, 2, 16
    latent_dim, hidden_dim, n_out = 4, 32, 1

    key = jax.random.PRNGKey(0)
    k_coord, k_z, k_params = jax.random.split(key, 3)

    coord = jax.random.normal(k_coord, (sq_len, batch, n_pts, 2), jnp.float32)
    z = jax.random.normal(k_z, (sq_len, batch, latent_dim), jnp.float32)
    params = init_params(k_params, latent_dim, hidden_dim, n_out)

    y = coordboost_forward(coord, z, params)
    y = jax.block_until_ready(y)

    y_ref = reference_forward(coord, z, params)
    assert y.shape == (sq_len, batch, n_pts * n_out), y.shape
    assert jnp.allclose(y, y_ref, atol=1e-5, rtol=1e-5), "mismatch vs reference"

    print("KERNEL_OK")
</pallas_src>

<mosaic_0001>
module attributes {stable_mosaic.version = 11 : i64} {
  func.func @_coordboost_kernel(%arg0: i32, %arg1: memref<128x2xf32, #tpu.memory_space<vmem>>, %arg2: memref<2x128xf32, #tpu.memory_space<vmem>>, %arg3: memref<1x128xf32, #tpu.memory_space<vmem>>, %arg4: memref<128x128xf32, #tpu.memory_space<vmem>>, %arg5: memref<1x128xf32, #tpu.memory_space<vmem>>, %arg6: memref<128x128xf32, #tpu.memory_space<vmem>>, %arg7: memref<1x128xf32, #tpu.memory_space<vmem>>, %arg8: memref<8x128xf32, #tpu.memory_space<vmem>>, %arg9: memref<8x1xf32, #tpu.memory_space<vmem>>, %arg10: memref<8x128xf32, #tpu.memory_space<vmem>>) attributes {dimension_semantics = [#tpu.dimension_semantics<parallel>], iteration_bounds = array<i64: 2>, scalar_prefetch = 0 : i64, scratch_operands = 0 : i64, tpu.core_type = #tpu.core_type<tc>, window_params = [{transform_indices = @transform_0, window_bounds = array<i64: 128, 2>}, {pipeline_mode = #tpu.pipeline_mode<synchronous>, transform_indices = @transform_1, window_bounds = array<i64: 2, 128>}, {pipeline_mode = #tpu.pipeline_mode<synchronous>, transform_indices = @transform_2, window_bounds = array<i64: 1, 128>}, {pipeline_mode = #tpu.pipeline_mode<synchronous>, transform_indices = @transform_3, window_bounds = array<i64: 128, 128>}, {pipeline_mode = #tpu.pipeline_mode<synchronous>, transform_indices = @transform_4, window_bounds = array<i64: 1, 128>}, {pipeline_mode = #tpu.pipeline_mode<synchronous>, transform_indices = @transform_5, window_bounds = array<i64: 128, 128>}, {pipeline_mode = #tpu.pipeline_mode<synchronous>, transform_indices = @transform_6, window_bounds = array<i64: 1, 128>}, {pipeline_mode = #tpu.pipeline_mode<synchronous>, transform_indices = @transform_7, window_bounds = array<i64: 8, 128>}, {pipeline_mode = #tpu.pipeline_mode<synchronous>, transform_indices = @transform_8, window_bounds = array<i64: 8, 1>}, {transform_indices = @transform_9, window_bounds = array<i64: 8, 128>}]} {
    %c0 = arith.constant 0 : index
    %c0_0 = arith.constant 0 : index
    %0 = vector.load %arg1[%c0, %c0_0] : memref<128x2xf32, #tpu.memory_space<vmem>>, vector<128x2xf32>
    %1 = vector.extract_strided_slice %0 {offsets = [0, 0], sizes = [128, 1], strides = [1, 1]} : vector<128x2xf32> to vector<128x1xf32>
    %c0_1 = arith.constant 0 : index
    %c0_2 = arith.constant 0 : index
    %2 = vector.load %arg2[%c0_1, %c0_2] : memref<2x128xf32, #tpu.memory_space<vmem>>, vector<1x128xf32>
    %3 = vector.broadcast %1 : vector<128x1xf32> to vector<128x128xf32>
    %4 = vector.broadcast %2 : vector<1x128xf32> to vector<128x128xf32>
    %5 = arith.mulf %3, %4 : vector<128x128xf32>
    %6 = vector.extract_strided_slice %0 {offsets = [0, 1], sizes = [128, 1], strides = [1, 1]} : vector<128x2xf32> to vector<128x1xf32>
    %c1 = arith.constant 1 : index
    %c0_3 = arith.constant 0 : index
    %7 = vector.load %arg2[%c1, %c0_3] : memref<2x128xf32, #tpu.memory_space<vmem>>, vector<1x128xf32>
    %8 = vector.broadcast %6 : vector<128x1xf32> to vector<128x128xf32>
    %9 = vector.broadcast %7 : vector<1x128xf32> to vector<128x128xf32>
    %10 = arith.mulf %8, %9 : vector<128x128xf32>
    %11 = arith.addf %5, %10 : vector<128x128xf32>
    %c0_4 = arith.constant 0 : index
    %c0_5 = arith.constant 0 : index
    %12 = vector.load %arg3[%c0_4, %c0_5] : memref<1x128xf32, #tpu.memory_space<vmem>>, vector<1x128xf32>
    %13 = vector.broadcast %12 : vector<1x128xf32> to vector<128x128xf32>
    %14 = arith.addf %11, %13 : vector<128x128xf32>
    %15 = math.tanh %14 : vector<128x128xf32>
    %c0_6 = arith.constant 0 : index
    %c0_7 = arith.constant 0 : index
    %16 = vector.load %arg4[%c0_6, %c0_7] : memref<128x128xf32, #tpu.memory_space<vmem>>, vector<128x128xf32>
    %cst = arith.constant dense<0.000000e+00> : vector<128x128xf32>
    %17 = tpu.matmul %15, %16, %cst {dimension_numbers = #tpu.dot_dimension_numbers<[1], [0], [0], [1], [0, 0, 1, 1], [], []>} : vector<128x128xf32>, vector<128x128xf32>, vector<128x128xf32> -> vector<128x128xf32>
    %c0_8 = arith.constant 0 : index
    %c0_9 = arith.constant 0 : index
    %18 = vector.load %arg5[%c0_8, %c0_9] : memref<1x128xf32, #tpu.memory_space<vmem>>, vector<1x128xf32>
    %19 = vector.broadcast %18 : vector<1x128xf32> to vector<128x128xf32>
    %20 = arith.addf %17, %19 : vector<128x128xf32>
    %21 = math.tanh %20 : vector<128x128xf32>
    %c0_10 = arith.constant 0 : index
    %c0_11 = arith.constant 0 : index
    %22 = vector.load %arg6[%c0_10, %c0_11] : memref<128x128xf32, #tpu.memory_space<vmem>>, vector<128x128xf32>
    %cst_12 = arith.constant dense<0.000000e+00> : vector<128x128xf32>
    %23 = tpu.matmul %21, %22, %cst_12 {dimension_numbers = #tpu.dot_dimension_numbers<[1], [0], [0], [1], [0, 0, 1, 1], [], []>} : vector<128x128xf32>, vector<128x128xf32>, vector<128x128xf32> -> vector<128x128xf32>
    %c0_13 = arith.constant 0 : index
    %c0_14 = arith.constant 0 : index
    %24 = vector.load %arg7[%c0_13, %c0_14] : memref<1x128xf32, #tpu.memory_space<vmem>>, vector<1x128xf32>
    %25 = vector.broadcast %24 : vector<1x128xf32> to vector<128x128xf32>
    %26 = arith.addf %23, %25 : vector<128x128xf32>
    %27 = math.tanh %26 : vector<128x128xf32>
    %c0_15 = arith.constant 0 : index
    %c0_16 = arith.constant 0 : index
    %28 = vector.load %arg8[%c0_15, %c0_16] : memref<8x128xf32, #tpu.memory_space<vmem>>, vector<8x128xf32>
    %cst_17 = arith.constant dense<0.000000e+00> : vector<8x128xf32>
    %29 = tpu.matmul %28, %27, %cst_17 {dimension_numbers = #tpu.dot_dimension_numbers<[1], [1], [0], [0], [0, 0, 1, 0], [], []>} : vector<8x128xf32>, vector<128x128xf32>, vector<8x128xf32> -> vector<8x128xf32>
    %c0_18 = arith.constant 0 : index
    %c0_19 = arith.constant 0 : index
    %30 = vector.load %arg9[%c0_18, %c0_19] : memref<8x1xf32, #tpu.memory_space<vmem>>, vector<8x1xf32>
    %31 = vector.broadcast %30 : vector<8x1xf32> to vector<8x128xf32>
    %32 = arith.addf %29, %31 : vector<8x128xf32>
    %c0_20 = arith.constant 0 : index
    %c0_21 = arith.constant 0 : index
    %33 = vector.load %arg10[%c0_20, %c0_21] : memref<8x128xf32, #tpu.memory_space<vmem>>, vector<8x128xf32>
    tpu.vector_store %arg10[%c0_20, %c0_21], %32 {strides = array<i32>} : memref<8x128xf32, #tpu.memory_space<vmem>>, vector<8x128xf32>,
    return
  }
  func.func @transform_0(%arg0: i32) -> (i32, i32) {
    %c0_i32 = arith.constant 0 : i32
    %c0_i32_0 = arith.constant 0 : i32
    return %arg0, %c0_i32 : i32, i32
  }
  func.func @transform_1(%arg0: i32) -> (i32, i32) {
    %c0_i32 = arith.constant 0 : i32
    %c0_i32_0 = arith.constant 0 : i32
    %c0_i32_1 = arith.constant 0 : i32
    return %c0_i32, %c0_i32_0 : i32, i32
  }
  func.func @transform_2(%arg0: i32) -> (i32, i32) {
    %c0_i32 = arith.constant 0 : i32
    %c0_i32_0 = arith.constant 0 : i32
    %c0_i32_1 = arith.constant 0 : i32
    return %c0_i32, %c0_i32_0 : i32, i32
  }
  func.func @transform_3(%arg0: i32) -> (i32, i32) {
    %c0_i32 = arith.constant 0 : i32
    %c0_i32_0 = arith.constant 0 : i32
    %c0_i32_1 = arith.constant 0 : i32
    return %c0_i32, %c0_i32_0 : i32, i32
  }
  func.func @transform_4(%arg0: i32) -> (i32, i32) {
    %c0_i32 = arith.constant 0 : i32
    %c0_i32_0 = arith.constant 0 : i32
    %c0_i32_1 = arith.constant 0 : i32
    return %c0_i32, %c0_i32_0 : i32, i32
  }
  func.func @transform_5(%arg0: i32) -> (i32, i32) {
    %c0_i32 = arith.constant 0 : i32
    %c0_i32_0 = arith.constant 0 : i32
    %c0_i32_1 = arith.constant 0 : i32
    return %c0_i32, %c0_i32_0 : i32, i32
  }
  func.func @transform_6(%arg0: i32) -> (i32, i32) {
    %c0_i32 = arith.constant 0 : i32
    %c0_i32_0 = arith.constant 0 : i32
    %c0_i32_1 = arith.constant 0 : i32
    return %c0_i32, %c0_i32_0 : i32, i32
  }
  func.func @transform_7(%arg0: i32) -> (i32, i32) {
    %c0_i32 = arith.constant 0 : i32
    %c0_i32_0 = arith.constant 0 : i32
    %c0_i32_1 = arith.constant 0 : i32
    return %c0_i32, %c0_i32_0 : i32, i32
  }
  func.func @transform_8(%arg0: i32) -> (i32, i32) {
    %c0_i32 = arith.constant 0 : i32
    %c0_i32_0 = arith.constant 0 : i32
    %c0_i32_1 = arith.constant 0 : i32
    return %c0_i32, %c0_i32_0 : i32, i32
  }
  func.func @transform_9(%arg0: i32) -> (i32, i32) {
    %c0_i32 = arith.constant 0 : i32
    %c0_i32_0 = arith.constant 0 : i32
    return %c0_i32, %arg0 : i32, i32
  }
}

</mosaic_0001>

<llo_original>
// kernel: tpu_custom_call.1
$region0: #{tpu_custom_call.1}
  #allocation0 [shape = 'u32[]', space=smem, size = 0x4, offset = 0x4, fixed_abs, tag = 'smem constant byte address 0x4 - core index']
  #allocation1 [shape = 'u32[144,128]{1,0:T(1,128)}', space=vmem, size = 0x12000, scoped, tag = 'internal scratch']
  %s0 = inlined_call_operand.vmem [shape: f32[256,2], index: 0, kind: input, shape index: {}]
  %s1 = inlined_call_operand.vmem [shape: f32[2,128], index: 1, kind: input, shape index: {}]
  %s2 = inlined_call_operand.vmem [shape: f32[1,128], index: 2, kind: input, shape index: {}]
  %s3 = inlined_call_operand.vmem [shape: f32[128,128], index: 3, kind: input, shape index: {}]
  %s4 = inlined_call_operand.vmem [shape: f32[1,128], index: 4, kind: input, shape index: {}]
  %s5 = inlined_call_operand.vmem [shape: f32[128,128], index: 5, kind: input, shape index: {}]
  %s6 = inlined_call_operand.vmem [shape: f32[1,128], index: 6, kind: input, shape index: {}]
  %s7 = inlined_call_operand.vmem [shape: f32[8,128], index: 7, kind: input, shape index: {}]
  %s8 = inlined_call_operand.vmem [shape: f32[8,1], index: 8, kind: input, shape index: {}]
  %s9 = inlined_call_operand.hbm [shape: f32[8,256], index: 9, kind: output, shape index: {}]
  %s10 = sld [smem:[#allocation0]]
  $region69: #{tpu_custom_call.1} parent=0
    _
  %s12 = ssub.s32 1, %s10
  %s13 = scalar_select 0, %s12, %s10
  $region1: #{tpu_custom_call.1} parent=0
    #allocation2 [shape = 'u8[8192]{0}', space=vmem, size = 0x2000, scoped, tag = 'output window, operand 0']
    #allocation3 [shape = 's32[2]{0}', space=sflag, size = 0x8, scoped, tag = 'scoped memory for tpu_custom_call.1']
    %14 = vsyncpa [#allocation3], 0
    %s15 = scalar_lea.sflag [#allocation3], 1
    %16 = vsyncpa %s15, 0
    loop: start=0, step=1, limit=4
    $region2: #{tpu_custom_call.1} parent=1 // loop_pre_header
      _
    $region3: #{tpu_custom_call.1} parent=1 // loop_header
      %s18 = sphi 0, %s22
      %p19 = scmp.ge.s32.totalorder %s18, 4
      %s28 = sphi 0, %s30
      %s31 = sphi 0, %s28
      %s32 = sphi 0, %s31
      %s48 = sphi 0, %s32
      %s52 = sphi 0, %s52
      %s54 = sphi 0, %s52
      %s55 = sphi 0, %s54
      %s69 = sphi 0, %s55
      %s73 = sphi 0, %s73
      %s75 = sphi 0, %s73
      %s76 = sphi 0, %s75
      %s90 = sphi 0, %s76
      %s94 = sphi 0, %s94
      %s96 = sphi 0, %s94
      %s97 = sphi 0, %s96
      %s111 = sphi 0, %s97
      %s115 = sphi 0, %s115
      %s117 = sphi 0, %s115
      %s118 = sphi 0, %s117
      %s132 = sphi 0, %s118
      %s136 = sphi 0, %s136
      %s138 = sphi 0, %s136
      %s139 = sphi 0, %s138
      %s153 = sphi 0, %s139
      %s157 = sphi 0, %s157
      %s159 = sphi 0, %s157
      %s160 = sphi 0, %s159
      %s174 = sphi 0, %s160
      %s178 = sphi 0, %s178
      %s180 = sphi 0, %s178
      %s181 = sphi 0, %s180
      %s195 = sphi 0, %s181
      %s199 = sphi 0, %s199
      %s201 = sphi 0, %s199
      %s202 = sphi 0, %s201
      %s216 = sphi 0, %s202
      %s222 = sphi 0, %s224
      %s225 = sphi 0, %s222
      %s226 = sphi 0, %s225
      %s242 = sphi 0, %s226
    $region4: #{tpu_custom_call.1} parent=1 // loop_header_branch
      %21 = sbr.rel (%p19) target = $region8
    $region5: #{tpu_custom_call.1} parent=1 // loop_body
      %s23 = ssub.s32 %s18, 1
      %s24 = ssub.s32 %s18, 2
      %s25 = sadd.s32 %s18, 1
      %s26 = ssub.s32 %s18, %s25
      %p27 = scmp.eq.s32.totalorder %s26, 0
      %s29 = sadd.s32 %s28, 1
      %s30 = scalar_select %p27, %s28, %s29
      %p33 = pneg %p27
      %p34 = scmp.eq.s32.totalorder %s18, 1
      %p35 = por %p33, %p34
      %p36 = scmp.ne.s32.totalorder %s28, %s31
      %p37 = scmp.eq.s32.totalorder %s18, 0
      %p38 = por %p36, %p37
      %p39 = scmp.ne.s32.totalorder %s28, %s31
      %p40 = scmp.eq.s32.totalorder %s23, 1
      %p41 = por %p39, %p40
      %p42 = scmp.ne.s32.totalorder %s31, %s32
      %p43 = scmp.eq.s32.totalorder %s23, 0
      %p44 = por %p42, %p43
      %p45 = scmp.ne.s32.totalorder %s31, %s32
      %p46 = scmp.eq.s32.totalorder %s24, 1
      %p47 = por %p45, %p46
      %p49 = scmp.ne.s32.totalorder %s32, %s48
      %p50 = scmp.eq.s32.totalorder %s24, 0
      %p51 = por %p49, %p50
      %s53 = sadd.s32 %s52, 1
      %p56 = scmp.eq.s32.totalorder %s18, 1
      %p57 = scmp.ne.s32.totalorder %s52, %s54
      %p58 = scmp.eq.s32.totalorder %s18, 0
      %p59 = por %p57, %p58
      %p60 = scmp.ne.s32.totalorder %s52, %s54
      %p61 = scmp.eq.s32.totalorder %s23, 1
      %p62 = por %p60, %p61
      %p63 = scmp.ne.s32.totalorder %s54, %s55
      %p64 = scmp.eq.s32.totalorder %s23, 0
      %p65 = por %p63, %p64
      %p66 = scmp.ne.s32.totalorder %s54, %s55
      %p67 = scmp.eq.s32.totalorder %s24, 1
      %p68 = por %p66, %p67
      %p70 = scmp.ne.s32.totalorder %s55, %s69
      %p71 = scmp.eq.s32.totalorder %s24, 0
      %p72 = por %p70, %p71
      %s74 = sadd.s32 %s73, 1
      %p77 = scmp.eq.s32.totalorder %s18, 1
      %p78 = scmp.ne.s32.totalorder %s73, %s75
      %p79 = scmp.eq.s32.totalorder %s18, 0
      %p80 = por %p78, %p79
      %p81 = scmp.ne.s32.totalorder %s73, %s75
      %p82 = scmp.eq.s32.totalorder %s23, 1
      %p83 = por %p81, %p82
      %p84 = scmp.ne.s32.totalorder %s75, %s76
      %p85 = scmp.eq.s32.totalorder %s23, 0
      %p86 = por %p84, %p85
      %p87 = scmp.ne.s32.totalorder %s75, %s76
      %p88 = scmp.eq.s32.totalorder %s24, 1
      %p89 = por %p87, %p88
      %p91 = scmp.ne.s32.totalorder %s76, %s90
      %p92 = scmp.eq.s32.totalorder %s24, 0
      %p93 = por %p91, %p92
      %s95 = sadd.s32 %s94, 1
      %p98 = scmp.eq.s32.totalorder %s18, 1
      %p99 = scmp.ne.s32.totalorder %s94, %s96
      %p100 = scmp.eq.s32.totalorder %s18, 0
      %p101 = por %p99, %p100
      %p102 = scmp.ne.s32.totalorder %s94, %s96
      %p103 = scmp.eq.s32.totalorder %s23, 1
      %p104 = por %p102, %p103
      %p105 = scmp.ne.s32.totalorder %s96, %s97
      %p106 = scmp.eq.s32.totalorder %s23, 0
      %p107 = por %p105, %p106
      %p108 = scmp.ne.s32.totalorder %s96, %s97
      %p109 = scmp.eq.s32.totalorder %s24, 1
      %p110 = por %p108, %p109
      %p112 = scmp.ne.s32.totalorder %s97, %s111
      %p113 = scmp.eq.s32.totalorder %s24, 0
      %p114 = por %p112, %p113
      %s116 = sadd.s32 %s115, 1
      %p119 = scmp.eq.s32.totalorder %s18, 1
      %p120 = scmp.ne.s32.totalorder %s115, %s117
      %p121 = scmp.eq.s32.totalorder %s18, 0
      %p122 = por %p120, %p121
      %p123 = scmp.ne.s32.totalorder %s115, %s117
      %p124 = scmp.eq.s32.totalorder %s23, 1
      %p125 = por %p123, %p124
      %p126 = scmp.ne.s32.totalorder %s117, %s118
      %p127 = scmp.eq.s32.totalorder %s23, 0
      %p128 = por %p126, %p127
      %p129 = scmp.ne.s32.totalorder %s117, %s118
      %p130 = scmp.eq.s32.totalorder %s24, 1
      %p131 = por %p129, %p130
      %p133 = scmp.ne.s32.totalorder %s118, %s132
      %p134 = scmp.eq.s32.totalorder %s24, 0
      %p135 = por %p133, %p134
      %s137 = sadd.s32 %s136, 1
      %p140 = scmp.eq.s32.totalorder %s18, 1
      %p141 = scmp.ne.s32.totalorder %s136, %s138
      %p142 = scmp.eq.s32.totalorder %s18, 0
      %p143 = por %p141, %p142
      %p144 = scmp.ne.s32.totalorder %s136, %s138
      %p145 = scmp.eq.s32.totalorder %s23, 1
      %p146 = por %p144, %p145
      %p147 = scmp.ne.s32.totalorder %s138, %s139
      %p148 = scmp.eq.s32.totalorder %s23, 0
      %p149 = por %p147, %p148
      %p150 = scmp.ne.s32.totalorder %s138, %s139
      %p151 = scmp.eq.s32.totalorder %s24, 1
      %p152 = por %p150, %p151
      %p154 = scmp.ne.s32.totalorder %s139, %s153
      %p155 = scmp.eq.s32.totalorder %s24, 0
      %p156 = por %p154, %p155
      %s158 = sadd.s32 %s157, 1
      %p161 = scmp.eq.s32.totalorder %s18, 1
      %p162 = scmp.ne.s32.totalorder %s157, %s159
      %p163 = scmp.eq.s32.totalorder %s18, 0
      %p164 = por %p162, %p163
      %p165 = scmp.ne.s32.totalorder %s157, %s159
      %p166 = scmp.eq.s32.totalorder %s23, 1
      %p167 = por %p165, %p166
      %p168 = scmp.ne.s32.totalorder %s159, %s160
      %p169 = scmp.eq.s32.totalorder %s23, 0
      %p170 = por %p168, %p169
      %p171 = scmp.ne.s32.totalorder %s159, %s160
      %p172 = scmp.eq.s32.totalorder %s24, 1
      %p173 = por %p171, %p172
      %p175 = scmp.ne.s32.totalorder %s160, %s174
      %p176 = scmp.eq.s32.totalorder %s24, 0
      %p177 = por %p175, %p176
      %s179 = sadd.s32 %s178, 1
      %p182 = scmp.eq.s32.totalorder %s18, 1
      %p183 = scmp.ne.s32.totalorder %s178, %s180
      %p184 = scmp.eq.s32.totalorder %s18, 0
      %p185 = por %p183, %p184
      %p186 = scmp.ne.s32.totalorder %s178, %s180
      %p187 = scmp.eq.s32.totalorder %s23, 1
      %p188 = por %p186, %p187
      %p189 = scmp.ne.s32.totalorder %s180, %s181
      %p190 = scmp.eq.s32.totalorder %s23, 0
      %p191 = por %p189, %p190
      %p192 = scmp.ne.s32.totalorder %s180, %s181
      %p193 = scmp.eq.s32.totalorder %s24, 1
      %p194 = por %p192, %p193
      %p196 = scmp.ne.s32.totalorder %s181, %s195
      %p197 = scmp.eq.s32.totalorder %s24, 0
      %p198 = por %p196, %p197
      %s200 = sadd.s32 %s199, 1
      %p203 = scmp.eq.s32.totalorder %s18, 1
      %p204 = scmp.ne.s32.totalorder %s199, %s201
      %p205 = scmp.eq.s32.totalorder %s18, 0
      %p206 = por %p204, %p205
      %p207 = scmp.ne.s32.totalorder %s199, %s201
      %p208 = scmp.eq.s32.totalorder %s23, 1
      %p209 = por %p207, %p208
      %p210 = scmp.ne.s32.totalorder %s201, %s202
      %p211 = scmp.eq.s32.totalorder %s23, 0
      %p212 = por %p210, %p211
      %p213 = scmp.ne.s32.totalorder %s201, %s202
      %p214 = scmp.eq.s32.totalorder %s24, 1
      %p215 = por %p213, %p214
      %p217 = scmp.ne.s32.totalorder %s202, %s216
      %p218 = scmp.eq.s32.totalorder %s24, 0
      %p219 = por %p217, %p218
      %s220 = ssub.s32 %s18, %s25
      %p221 = scmp.eq.s32.totalorder %s220, 0
      %s223 = sadd.s32 %s222, 1
      %s224 = scalar_select %p221, %s222, %s223
      %p227 = pneg %p221
      %p228 = scmp.eq.s32.totalorder %s18, 1
      %p229 = por %p227, %p228
      %p230 = scmp.ne.s32.totalorder %s222, %s225
      %p231 = scmp.eq.s32.totalorder %s18, 0
      %p232 = por %p230, %p231
      %p233 = scmp.ne.s32.totalorder %s222, %s225
      %p234 = scmp.eq.s32.totalorder %s23, 1
      %p235 = por %p233, %p234
      %p236 = scmp.ne.s32.totalorder %s225, %s226
      %p237 = scmp.eq.s32.totalorder %s23, 0
      %p238 = por %p236, %p237
      %p239 = scmp.ne.s32.totalorder %s225, %s226
      %p240 = scmp.eq.s32.totalorder %s24, 1
      %p241 = por %p239, %p240
      %p243 = scmp.ne.s32.totalorder %s226, %s242
      %p244 = scmp.eq.s32.totalorder %s24, 0
      %p245 = por %p243, %p244
      %p246 = scmp.le.s32.totalorder 1, %s18
      %p247 = scmp.lt.s32.totalorder %s18, 3
      %p248 = pnand %p246, %p247
      %p249 = pneg %p248
      // Predicated region
      $region9: #{tpu_custom_call.1} parent=5 // pred_check
        _
      $region10: #{tpu_custom_call.1} parent=5 // pred_check_branch
        %251 = sbr.rel (%p248) target = $region12
      $region11: #{tpu_custom_call.1} parent=5 // pred_region
        %s252 = ssub.s32 %s18, 1
        // Predicated region
        $region13: #{tpu_custom_call.1} parent=11 // pred_check
          %p253 = pneg %p65
        $region14: #{tpu_custom_call.1} parent=11 // pred_check_branch
          %255 = sbr.rel (%p253) target = $region16
        $region15: #{tpu_custom_call.1} parent=11 // pred_region
          _
        $region16: #{tpu_custom_call.1} parent=11 // pred_fallthru
          _
        // Predicated region
        $region17: #{tpu_custom_call.1} parent=11 // pred_check
          %p256 = pneg %p86
        $region18: #{tpu_custom_call.1} parent=11 // pred_check_branch
          %258 = sbr.rel (%p256) target = $region20
        $region19: #{tpu_custom_call.1} parent=11 // pred_region
          _
        $region20: #{tpu_custom_call.1} parent=11 // pred_fallthru
          _
        // Predicated region
        $region21: #{tpu_custom_call.1} parent=11 // pred_check
          %p259 = pneg %p107
        $region22: #{tpu_custom_call.1} parent=11 // pred_check_branch
          %261 = sbr.rel (%p259) target = $region24
        $region23: #{tpu_custom_call.1} parent=11 // pred_region
          _
        $region24: #{tpu_custom_call.1} parent=11 // pred_fallthru
          _
        // Predicated region
        $region25: #{tpu_custom_call.1} parent=11 // pred_check
          %p262 = pneg %p128
        $region26: #{tpu_custom_call.1} parent=11 // pred_check_branch
          %264 = sbr.rel (%p262) target = $region28
        $region27: #{tpu_custom_call.1} parent=11 // pred_region
          _
        $region28: #{tpu_custom_call.1} parent=11 // pred_fallthru
          _
        // Predicated region
        $region29: #{tpu_custom_call.1} parent=11 // pred_check
          %p265 = pneg %p149
        $region30: #{tpu_custom_call.1} parent=11 // pred_check_branch
          %267 = sbr.rel (%p265) target = $region32
        $region31: #{tpu_custom_call.1} parent=11 // pred_region
          _
        $region32: #{tpu_custom_call.1} parent=11 // pred_fallthru
          _
        // Predicated region
        $region33: #{tpu_custom_call.1} parent=11 // pred_check
          %p268 = pneg %p170
        $region34: #{tpu_custom_call.1} parent=11 // pred_check_branch
          %270 = sbr.rel (%p268) target = $region36
        $region35: #{tpu_custom_call.1} parent=11 // pred_region
          _
        $region36: #{tpu_custom_call.1} parent=11 // pred_fallthru
          _
        // Predicated region
        $region37: #{tpu_custom_call.1} parent=11 // pred_check
          %p271 = pneg %p191
        $region38: #{tpu_custom_call.1} parent=11 // pred_check_branch
          %273 = sbr.rel (%p271) target = $region40
        $region39: #{tpu_custom_call.1} parent=11 // pred_region
          _
        $region40: #{tpu_custom_call.1} parent=11 // pred_fallthru
          _
        // Predicated region
        $region41: #{tpu_custom_call.1} parent=11 // pred_check
          %p274 = pneg %p212
        $region42: #{tpu_custom_call.1} parent=11 // pred_check_branch
          %276 = sbr.rel (%p274) target = $region44
        $region43: #{tpu_custom_call.1} parent=11 // pred_region
          _
        $region44: #{tpu_custom_call.1} parent=11 // pred_fallthru
          _
      $region12: #{tpu_custom_call.1} parent=5 // pred_fallthru
        _
      %p277 = scmp.lt.s32.totalorder %s18, 2
      // Predicated region
      $region45: #{tpu_custom_call.1} parent=5 // pred_check
        %p278 = pneg %p277
      $region46: #{tpu_custom_call.1} parent=5 // pred_check_branch
        %280 = sbr.rel (%p278) target = $region48
      $region47: #{tpu_custom_call.1} parent=5 // pred_region
        // Predicated region
        $region49: #{tpu_custom_call.1} parent=47 // pred_check
          %p281 = pneg %p38
        $region50: #{tpu_custom_call.1} parent=47 // pred_check_branch
          %283 = sbr.rel (%p281) target = $region52
        $region51: #{tpu_custom_call.1} parent=47 // pred_region
          %s284 = smul.u32 16, %s18
          %p285 = scmp.lt.s32.totalorder %s284, 31
          %s286 = scalar_select %p285, %s284, 31
          %s287 = smul.addr %s286, 8
          %s288 = scalar_lea.vmem %s0, %s287
          %s289 = smul.u32 16, %s18
        $region52: #{tpu_custom_call.1} parent=47 // pred_fallthru
          _
      $region48: #{tpu_custom_call.1} parent=5 // pred_fallthru
        _
      %p290 = scmp.le.s32.totalorder 1, %s18
      %p291 = scmp.lt.s32.totalorder %s18, 3
      %p292 = pnand %p290, %p291
      %p293 = pneg %p292
      // Predicated region
      $region53: #{tpu_custom_call.1} parent=5 // pred_check
        _
      $region54: #{tpu_custom_call.1} parent=5 // pred_check_branch
        %295 = sbr.rel (%p292) target = $region56
      $region55: #{tpu_custom_call.1} parent=5 // pred_region
        %s296 = ssub.s32 %s18, 1
        %s297 = smul.u32 16, %s23
        %p298 = scmp.lt.s32.totalorder %s297, 31
        %s299 = scalar_select %p298, %s297, 31
        %s300 = smul.addr %s299, 8
        %s301 = scalar_lea.vmem %s0, %s300
        %p302 = pneg %p44
        %p303 = pneg %p41
        %p304 = pneg %p65
        %p305 = pneg %p62
        %p306 = pneg %p86
        %p307 = pneg %p83
        %p308 = pneg %p107
        %p309 = pneg %p104
        %p310 = pneg %p128
        %p311 = pneg %p125
        %p312 = pneg %p149
        %p313 = pneg %p146
        %p314 = pneg %p170
        %p315 = pneg %p167
        %p316 = pneg %p191
        %p317 = pneg %p188
        %p318 = pneg %p212
        %p319 = pneg %p209
        %p320 = pneg %p238
        %p321 = pneg %p235
        %s322 = sand.u32 %s225, 1
        %s323 = scalar_lea.sflag [#allocation3], %s322
        %s324 = sand.u32 %s225, 1
        %s325 = smul.addr %s324, 8
        %s326 = scalar_lea.vmem [#allocation2], %s325
        %s327 = smul.u32 16, %s23
        %p328 = scmp.lt.s32.totalorder %s327, 31
        %s329 = scalar_select %p328, %s327, 31
        %s330 = smul.addr %s329, 8
        %s331 = scalar_lea.vmem %s0, %s330
        %s332 = smul.u32 16, %s23
        %v333 = vld [vmem:[%s331] sm:$0xff]
        %v334 = vld [vmem:[%s331 + $0x8] sm:$0xff]
        %v335 = vld [vmem:[%s331 + $0x10] sm:$0xff]
        %v336 = vld [vmem:[%s331 + $0x18] sm:$0xff]
        %v337 = vld [vmem:[%s331 + $0x20] sm:$0xff]
        %v338 = vld [vmem:[%s331 + $0x28] sm:$0xff]
        %v339 = vld [vmem:[%s331 + $0x30] sm:$0xff]
        %v340 = vld [vmem:[%s331 + $0x38] sm:$0xff]
        %v341 = vld [vmem:[%s331 + $0x40] sm:$0xff]
        %v342 = vld [vmem:[%s331 + $0x48] sm:$0xff]
        %v343 = vld [vmem:[%s331 + $0x50] sm:$0xff]
        %v344 = vld [vmem:[%s331 + $0x58] sm:$0xff]
        %v345 = vld [vmem:[%s331 + $0x60] sm:$0xff]
        %v346 = vld [vmem:[%s331 + $0x68] sm:$0xff]
        %v347 = vld [vmem:[%s331 + $0x70] sm:$0xff]
        %v348 = vld [vmem:[%s331 + $0x78] sm:$0xff]
        %v349 = vld [vmem:[%s1] sm:$0x1]
        %351 = vset.pattern.permute.xlu0 0
        %352 = vperm.xlu0 %351, %v333
        %v353 = vpop.permute.xlu0 %352
        %356 = vset.pattern.permute.xlu0 0
        %357 = vperm.xlu0 %356, %v334
        %v358 = vpop.permute.xlu0 %357
        %361 = vset.pattern.permute.xlu0 0
        %362 = vperm.xlu0 %361, %v335
        %v363 = vpop.permute.xlu0 %362
        %366 = vset.pattern.permute.xlu0 0
        %367 = vperm.xlu0 %366, %v336
        %v368 = vpop.permute.xlu0 %367
        %371 = vset.pattern.permute.xlu0 0
        %372 = vperm.xlu0 %371, %v337
        %v373 = vpop.permute.xlu0 %372
        %376 = vset.pattern.permute.xlu0 0
        %377 = vperm.xlu0 %376, %v338
        %v378 = vpop.permute.xlu0 %377
        %381 = vset.pattern.permute.xlu0 0
        %382 = vperm.xlu0 %381, %v339
        %v383 = vpop.permute.xlu0 %382
        %386 = vset.pattern.permute.xlu0 0
        %387 = vperm.xlu0 %386, %v340
        %v388 = vpop.permute.xlu0 %387
        %391 = vset.pattern.permute.xlu0 0
        %392 = vperm.xlu0 %391, %v341
        %v393 = vpop.permute.xlu0 %392
        %396 = vset.pattern.permute.xlu0 0
        %397 = vperm.xlu0 %396, %v342
        %v398 = vpop.permute.xlu0 %397
        %401 = vset.pattern.permute.xlu0 0
        %402 = vperm.xlu0 %401, %v343
        %v403 = vpop.permute.xlu0 %402
        %406 = vset.pattern.permute.xlu0 0
        %407 = vperm.xlu0 %406, %v344
        %v408 = vpop.permute.xlu0 %407
        %411 = vset.pattern.permute.xlu0 0
        %412 = vperm.xlu0 %411, %v345
        %v413 = vpop.permute.xlu0 %412
        %416 = vset.pattern.permute.xlu0 0
        %417 = vperm.xlu0 %416, %v346
        %v418 = vpop.permute.xlu0 %417
        %421 = vset.pattern.permute.xlu0 0
        %422 = vperm.xlu0 %421, %v347
        %v423 = vpop.permute.xlu0 %422
        %426 = vset.pattern.permute.xlu0 0
        %427 = vperm.xlu0 %426, %v348
        %v428 = vpop.permute.xlu0 %427
        %v430 = vlaneseq
        %v431 = vshrl.u32 %v430, 7
        %v432 = vsub.s32 0, %v431
        %v433 = vrot.slane %v349, %v432
        %v434 = vmul.f32 %v353, %v433
        %v435 = vmul.f32 %v358, %v433
        %v436 = vmul.f32 %v363, %v433
        %v437 = vmul.f32 %v368, %v433
        %v438 = vmul.f32 %v373, %v433
        %v439 = vmul.f32 %v378, %v433
        %v440 = vmul.f32 %v383, %v433
        %v441 = vmul.f32 %v388, %v433
        %v442 = vmul.f32 %v393, %v433
        %v443 = vmul.f32 %v398, %v433
        %v444 = vmul.f32 %v403, %v433
        %v445 = vmul.f32 %v408, %v433
        %v446 = vmul.f32 %v413, %v433
        %v447 = vmul.f32 %v418, %v433
        %v448 = vmul.f32 %v423, %v433
        %v449 = vmul.f32 %v428, %v433
        %v450 = vld [vmem:[%s1 + $0x1] sm:$0x1]
        %451 = vset.pattern.permute.xlu0 1
        %452 = vperm.xlu0 %451, %v333
        %v453 = vpop.permute.xlu0 %452
        %455 = vset.pattern.permute.xlu0 1
        %456 = vperm.xlu0 %455, %v334
        %v457 = vpop.permute.xlu0 %456
        %459 = vset.pattern.permute.xlu0 1
        %460 = vperm.xlu0 %459, %v335
        %v461 = vpop.permute.xlu0 %460
        %463 = vset.pattern.permute.xlu0 1
        %464 = vperm.xlu0 %463, %v336
        %v465 = vpop.permute.xlu0 %464
        %467 = vset.pattern.permute.xlu0 1
        %468 = vperm.xlu0 %467, %v337
        %v469 = vpop.permute.xlu0 %468
        %471 = vset.pattern.permute.xlu0 1
        %472 = vperm.xlu0 %471, %v338
        %v473 = vpop.permute.xlu0 %472
        %475 = vset.pattern.permute.xlu0 1
        %476 = vperm.xlu0 %475, %v339
        %v477 = vpop.permute.xlu0 %476
        %479 = vset.pattern.permute.xlu0 1
        %480 = vperm.xlu0 %479, %v340
        %v481 = vpop.permute.xlu0 %480
        %483 = vset.pattern.permute.xlu0 1
        %484 = vperm.xlu0 %483, %v341
        %v485 = vpop.permute.xlu0 %484
        %487 = vset.pattern.permute.xlu0 1
        %488 = vperm.xlu0 %487, %v342
        %v489 = vpop.permute.xlu0 %488
        %491 = vset.pattern.permute.xlu0 1
        %492 = vperm.xlu0 %491, %v343
        %v493 = vpop.permute.xlu0 %492
        %495 = vset.pattern.permute.xlu0 1
        %496 = vperm.xlu0 %495, %v344
        %v497 = vpop.permute.xlu0 %496
        %499 = vset.pattern.permute.xlu0 1
        %500 = vperm.xlu0 %499, %v345
        %v501 = vpop.permute.xlu0 %500
        %503 = vset.pattern.permute.xlu0 1
        %504 = vperm.xlu0 %503, %v346
        %v505 = vpop.permute.xlu0 %504
        %507 = vset.pattern.permute.xlu0 1
        %508 = vperm.xlu0 %507, %v347
        %v509 = vpop.permute.xlu0 %508
        %511 = vset.pattern.permute.xlu0 1
        %512 = vperm.xlu0 %511, %v348
        %v513 = vpop.permute.xlu0 %512
        %v515 = vlaneseq
        %v516 = vshrl.u32 %v515, 7
        %v517 = vsub.s32 0, %v516
        %v518 = vrot.slane %v450, %v517
        %v519 = vmul.f32 %v453, %v518
        %v520 = vmul.f32 %v457, %v518
        %v521 = vmul.f32 %v461, %v518
        %v522 = vmul.f32 %v465, %v518
        %v523 = vmul.f32 %v469, %v518
        %v524 = vmul.f32 %v473, %v518
        %v525 = vmul.f32 %v477, %v518
        %v526 = vmul.f32 %v481, %v518
        %v527 = vmul.f32 %v485, %v518
        %v528 = vmul.f32 %v489, %v518
        %v529 = vmul.f32 %v493, %v518
        %v530 = vmul.f32 %v497, %v518
        %v531 = vmul.f32 %v501, %v518
        %v532 = vmul.f32 %v505, %v518
        %v533 = vmul.f32 %v509, %v518
        %v534 = vmul.f32 %v513, %v518
        %v535 = vadd.f32 %v434, %v519
        %v536 = vadd.f32 %v435, %v520
        %v537 = vadd.f32 %v436, %v521
        %v538 = vadd.f32 %v437, %v522
        %v539 = vadd.f32 %v438, %v523
        %v540 = vadd.f32 %v439, %v524
        %v541 = vadd.f32 %v440, %v525
        %v542 = vadd.f32 %v441, %v526
        %v543 = vadd.f32 %v442, %v527
        %v544 = vadd.f32 %v443, %v528
        %v545 = vadd.f32 %v444, %v529
        %v546 = vadd.f32 %v445, %v530
        %v547 = vadd.f32 %v446, %v531
        %v548 = vadd.f32 %v447, %v532
        %v549 = vadd.f32 %v448, %v533
        %v550 = vadd.f32 %v449, %v534
        %v551 = vld [vmem:[%s2] sm:$0x1]
        %v553 = vlaneseq
        %v554 = vshrl.u32 %v553, 7
        %v555 = vsub.s32 0, %v554
        %v556 = vrot.slane %v551, %v555
        %v558 = vadd.f32 %v535, %v556
        %v559 = vadd.f32 %v536, %v556
        %v560 = vadd.f32 %v537, %v556
        %v561 = vadd.f32 %v538, %v556
        %v562 = vadd.f32 %v539, %v556
        %v563 = vadd.f32 %v540, %v556
        %v564 = vadd.f32 %v541, %v556
        %v565 = vadd.f32 %v542, %v556
        %v566 = vadd.f32 %v543, %v556
        %v567 = vadd.f32 %v544, %v556
        %v568 = vadd.f32 %v545, %v556
        %v569 = vadd.f32 %v546, %v556
        %v570 = vadd.f32 %v547, %v556
        %v571 = vadd.f32 %v548, %v556
        %v572 = vadd.f32 %v549, %v556
        %v573 = vadd.f32 %v550, %v556
        %v574 = vtanh.pop %v558
        %v575 = vtanh.pop %v559
        %v576 = vtanh.pop %v560
        %v577 = vtanh.pop %v561
        %v578 = vtanh.pop %v562
        %v579 = vtanh.pop %v563
        %v580 = vtanh.pop %v564
        %v581 = vtanh.pop %v565
        %v582 = vtanh.pop %v566
        %v583 = vtanh.pop %v567
        %v584 = vtanh.pop %v568
        %v585 = vtanh.pop %v569
        %v586 = vtanh.pop %v570
        %v587 = vtanh.pop %v571
        %v588 = vtanh.pop %v572
        %v589 = vtanh.pop %v573
        %v590 = vld [vmem:[%s3] sm:$0xff]
        %v591 = vld [vmem:[%s3 + $0x8] sm:$0xff]
        %v592 = vld [vmem:[%s3 + $0x10] sm:$0xff]
        %v593 = vld [vmem:[%s3 + $0x18] sm:$0xff]
        %v594 = vld [vmem:[%s3 + $0x20] sm:$0xff]
        %v595 = vld [vmem:[%s3 + $0x28] sm:$0xff]
        %v596 = vld [vmem:[%s3 + $0x30] sm:$0xff]
        %v597 = vld [vmem:[%s3 + $0x38] sm:$0xff]
        %v598 = vld [vmem:[%s3 + $0x40] sm:$0xff]
        %v599 = vld [vmem:[%s3 + $0x48] sm:$0xff]
        %v600 = vld [vmem:[%s3 + $0x50] sm:$0xff]
        %v601 = vld [vmem:[%s3 + $0x58] sm:$0xff]
        %v602 = vld [vmem:[%s3 + $0x60] sm:$0xff]
        %v603 = vld [vmem:[%s3 + $0x68] sm:$0xff]
        %v604 = vld [vmem:[%s3 + $0x70] sm:$0xff]
        %v605 = vld [vmem:[%s3 + $0x78] sm:$0xff]
        %v606 = vld [vmem:[%s4] sm:$0x1]
        %v608 = vlaneseq
        %v609 = vshrl.u32 %v608, 7
        %v610 = vsub.s32 0, %v609
        %v611 = vrot.slane %v606, %v610
        %613 = vmatprep.subr.mxu0 0.0
        %614 = vmatpush1.msra.mxu0 %v590
        %615 = vmatprep.subr.mxu0 0.0
        %616 = vmatpush1.msra.mxu0 %v591
        %617 = vmatprep.subr.mxu0 0.0
        %618 = vmatpush1.msra.mxu0 %v592
        %619 = vmatprep.subr.mxu0 0.0
        %620 = vmatpush1.msra.mxu0 %v593
        %621 = vmatprep.subr.mxu0 0.0
        %622 = vmatpush1.msra.mxu0 %v594
        %623 = vmatprep.subr.mxu0 0.0
        %624 = vmatpush1.msra.mxu0 %v595
        %625 = vmatprep.subr.mxu0 0.0
        %626 = vmatpush1.msra.mxu0 %v596
        %627 = vmatprep.subr.mxu0 0.0
        %628 = vmatpush1.msra.mxu0 %v597
        %629 = vmatprep.subr.mxu0 0.0
        %630 = vmatpush1.msra.mxu0 %v598
        %631 = vmatprep.subr.mxu0 0.0
        %632 = vmatpush1.msra.mxu0 %v599
        %633 = vmatprep.subr.mxu0 0.0
        %634 = vmatpush1.msra.mxu0 %v600
        %635 = vmatprep.subr.mxu0 0.0
        %636 = vmatpush1.msra.mxu0 %v601
        %637 = vmatprep.subr.mxu0 0.0
        %638 = vmatpush1.msra.mxu0 %v602
        %639 = vmatprep.subr.mxu0 0.0
        %640 = vmatpush1.msra.mxu0 %v603
        %641 = vmatprep.subr.mxu0 0.0
        %642 = vmatpush1.msra.mxu0 %v604
        %643 = vmatprep.subr.mxu0 0.0
        %644 = vmatpush1.msra.mxu0 %v605
        %645 = vmatprep.subr.mxu0 0.0
        %646 = vmatpush1.msra.mxu0 0.0
        %647 = vmatprep.subr.mxu0 0.0
        %648 = vmatpush1.msra.mxu0 0.0
        %649 = vmatprep.subr.mxu0 0.0
        %650 = vmatpush1.msra.mxu0 0.0
        %651 = vmatprep.subr.mxu0 0.0
        %652 = vmatpush1.msra.mxu0 0.0
        %653 = vmatprep.subr.mxu0 0.0
        %654 = vmatpush1.msra.mxu0 0.0
        %655 = vmatprep.subr.mxu0 0.0
        %656 = vmatpush1.msra.mxu0 0.0
        %657 = vmatprep.subr.mxu0 0.0
        %658 = vmatpush1.msra.mxu0 0.0
        %659 = vmatprep.subr.mxu0 0.0
        %660 = vmatpush1.msra.mxu0 0.0
        %661 = vmatprep.subr.mxu0 0.0
        %662 = vmatpush1.msra.mxu0 0.0
        %663 = vmatprep.subr.mxu0 0.0
        %664 = vmatpush1.msra.mxu0 0.0
        %665 = vmatprep.subr.mxu0 0.0
        %666 = vmatpush1.msra.mxu0 0.0
        %667 = vmatprep.subr.mxu0 0.0
        %668 = vmatpush1.msra.mxu0 0.0
        %669 = vmatprep.subr.mxu0 0.0
        %670 = vmatpush1.msra.mxu0 0.0
        %671 = vmatprep.subr.mxu0 0.0
        %672 = vmatpush1.msra.mxu0 0.0
        %673 = vmatprep.subr.mxu0 0.0
        %674 = vmatpush1.msra.mxu0 0.0
        %675 = vmatprep.subr.mxu0 0.0
        %676 = vmatpush1.msra.mxu0 0.0
        %677 = vmatprep.mubr.f32.mxu0 0.0
        %678 = vmatmul.mubr.f32.gmra.mrb[0].mxu0 %v574
        %v679 = vpop.f32.mrb[0].mxu0
        %v680 = vadd.f32 %v611, %v679
        %v681 = vpop.f32.mrb[0].mxu0
        %682 = vmatprep.mubr.f32.mxu0 0.0
        %683 = vmatmul.mubr.f32.gmra.mrb[0].mxu0 %v575
        %v684 = vpop.f32.mrb[0].mxu0
        %v685 = vadd.f32 %v611, %v684
        %v686 = vpop.f32.mrb[0].mxu0
        %687 = vmatprep.mubr.f32.mxu0 0.0
        %688 = vmatmul.mubr.f32.gmra.mrb[0].mxu0 %v576
        %v689 = vpop.f32.mrb[0].mxu0
        %v690 = vadd.f32 %v611, %v689
        %v691 = vpop.f32.mrb[0].mxu0
        %692 = vmatprep.mubr.f32.mxu0 0.0
        %693 = vmatmul.mubr.f32.gmra.mrb[0].mxu0 %v577
        %v694 = vpop.f32.mrb[0].mxu0
        %v695 = vadd.f32 %v611, %v694
        %v696 = vpop.f32.mrb[0].mxu0
        %697 = vmatprep.mubr.f32.mxu0 0.0
        %698 = vmatmul.mubr.f32.gmra.mrb[0].mxu0 %v578
        %v699 = vpop.f32.mrb[0].mxu0
        %v700 = vadd.f32 %v611, %v699
        %v701 = vpop.f32.mrb[0].mxu0
        %702 = vmatprep.mubr.f32.mxu0 0.0
        %703 = vmatmul.mubr.f32.gmra.mrb[0].mxu0 %v579
        %v704 = vpop.f32.mrb[0].mxu0
        %v705 = vadd.f32 %v611, %v704
        %v706 = vpop.f32.mrb[0].mxu0
        %707 = vmatprep.mubr.f32.mxu0 0.0
        %708 = vmatmul.mubr.f32.gmra.mrb[0].mxu0 %v580
        %v709 = vpop.f32.mrb[0].mxu0
        %v710 = vadd.f32 %v611, %v709
        %v711 = vpop.f32.mrb[0].mxu0
        %712 = vmatprep.mubr.f32.mxu0 0.0
        %713 = vmatmul.mubr.f32.gmra.mrb[0].mxu0 %v581
        %v714 = vpop.f32.mrb[0].mxu0
        %v715 = vadd.f32 %v611, %v714
        %v716 = vpop.f32.mrb[0].mxu0
        %717 = vmatprep.mubr.f32.mxu0 0.0
        %718 = vmatmul.mubr.f32.gmra.mrb[0].mxu0 %v582
        %v719 = vpop.f32.mrb[0].mxu0
        %v720 = vadd.f32 %v611, %v719
        %v721 = vpop.f32.mrb[0].mxu0
        %722 = vmatprep.mubr.f32.mxu0 0.0
        %723 = vmatmul.mubr.f32.gmra.mrb[0].mxu0 %v583
        %v724 = vpop.f32.mrb[0].mxu0
        %v725 = vadd.f32 %v611, %v724
        %v726 = vpop.f32.mrb[0].mxu0
        %727 = vmatprep.mubr.f32.mxu0 0.0
        %728 = vmatmul.mubr.f32.gmra.mrb[0].mxu0 %v584
        %v729 = vpop.f32.mrb[0].mxu0
        %v730 = vadd.f32 %v611, %v729
        %v731 = vpop.f32.mrb[0].mxu0
        %732 = vmatprep.mubr.f32.mxu0 0.0
        %733 = vmatmul.mubr.f32.gmra.mrb[0].mxu0 %v585
        %v734 = vpop.f32.mrb[0].mxu0
        %v735 = vadd.f32 %v611, %v734
        %v736 = vpop.f32.mrb[0].mxu0
        %737 = vmatprep.mubr.f32.mxu0 0.0
        %738 = vmatmul.mubr.f32.gmra.mrb[0].mxu0 %v586
        %v739 = vpop.f32.mrb[0].mxu0
        %v740 = vadd.f32 %v611, %v739
        %v741 = vpop.f32.mrb[0].mxu0
        %742 = vmatprep.mubr.f32.mxu0 0.0
        %743 = vmatmul.mubr.f32.gmra.mrb[0].mxu0 %v587
        %v744 = vpop.f32.mrb[0].mxu0
        %v745 = vadd.f32 %v611, %v744
        %v746 = vpop.f32.mrb[0].mxu0
        %747 = vmatprep.mubr.f32.mxu0 0.0
        %748 = vmatmul.mubr.f32.gmra.mrb[0].mxu0 %v588
        %v749 = vpop.f32.mrb[0].mxu0
        %v750 = vadd.f32 %v611, %v749
        %v751 = vpop.f32.mrb[0].mxu0
        %752 = vmatprep.mubr.f32.mxu0 0.0
        %753 = vmatmul.mubr.f32.gmra.mrb[0].mxu0 %v589
        %v754 = vpop.f32.mrb[0].mxu0
        %v755 = vadd.f32 %v611, %v754
        %v756 = vpop.f32.mrb[0].mxu0
        %757 = vdwg.mxu0
        %v758 = vtanh.pop %v680
        %v759 = vtanh.pop %v685
        %v760 = vtanh.pop %v690
        %v761 = vtanh.pop %v695
        %v762 = vtanh.pop %v700
        %v763 = vtanh.pop %v705
        %v764 = vtanh.pop %v710
        %v765 = vtanh.pop %v715
        %v766 = vtanh.pop %v720
        %v767 = vtanh.pop %v725
        %v768 = vtanh.pop %v730
        %v769 = vtanh.pop %v735
        %v770 = vtanh.pop %v740
        %v771 = vtanh.pop %v745
        %v772 = vtanh.pop %v750
        %v773 = vtanh.pop %v755
        %v774 = vld [vmem:[%s5] sm:$0xff]
        %v775 = vld [vmem:[%s5 + $0x8] sm:$0xff]
        %v776 = vld [vmem:[%s5 + $0x10] sm:$0xff]
        %v777 = vld [vmem:[%s5 + $0x18] sm:$0xff]
        %v778 = vld [vmem:[%s5 + $0x20] sm:$0xff]
        %v779 = vld [vmem:[%s5 + $0x28] sm:$0xff]
        %v780 = vld [vmem:[%s5 + $0x30] sm:$0xff]
        %v781 = vld [vmem:[%s5 + $0x38] sm:$0xff]
        %v782 = vld [vmem:[%s5 + $0x40] sm:$0xff]
        %v783 = vld [vmem:[%s5 + $0x48] sm:$0xff]
        %v784 = vld [vmem:[%s5 + $0x50] sm:$0xff]
        %v785 = vld [vmem:[%s5 + $0x58] sm:$0xff]
        %v786 = vld [vmem:[%s5 + $0x60] sm:$0xff]
        %v787 = vld [vmem:[%s5 + $0x68] sm:$0xff]
        %v788 = vld [vmem:[%s5 + $0x70] sm:$0xff]
        %v789 = vld [vmem:[%s5 + $0x78] sm:$0xff]
        %v790 = vld [vmem:[%s6] sm:$0x1]
        %v792 = vlaneseq
        %v793 = vshrl.u32 %v792, 7
        %v794 = vsub.s32 0, %v793
        %v795 = vrot.slane %v790, %v794
        %797 = vmatprep.subr.mxu0 0.0
        %798 = vmatpush1.msra.mxu0 %v774
        %799 = vmatprep.subr.mxu0 0.0
        %800 = vmatpush1.msra.mxu0 %v775
        %801 = vmatprep.subr.mxu0 0.0
        %802 = vmatpush1.msra.mxu0 %v776
        %803 = vmatprep.subr.mxu0 0.0
        %804 = vmatpush1.msra.mxu0 %v777
        %805 = vmatprep.subr.mxu0 0.0
        %806 = vmatpush1.msra.mxu0 %v778
        %807 = vmatprep.subr.mxu0 0.0
        %808 = vmatpush1.msra.mxu0 %v779
        %809 = vmatprep.subr.mxu0 0.0
        %810 = vmatpush1.msra.mxu0 %v780
        %811 = vmatprep.subr.mxu0 0.0
        %812 = vmatpush1.msra.mxu0 %v781
        %813 = vmatprep.subr.mxu0 0.0
        %814 = vmatpush1.msra.mxu0 %v782
        %815 = vmatprep.subr.mxu0 0.0
        %816 = vmatpush1.msra.mxu0 %v783
        %817 = vmatprep.subr.mxu0 0.0
        %818 = vmatpush1.msra.mxu0 %v784
        %819 = vmatprep.subr.mxu0 0.0
        %820 = vmatpush1.msra.mxu0 %v785
        %821 = vmatprep.subr.mxu0 0.0
        %822 = vmatpush1.msra.mxu0 %v786
        %823 = vmatprep.subr.mxu0 0.0
        %824 = vmatpush1.msra.mxu0 %v787
        %825 = vmatprep.subr.mxu0 0.0
        %826 = vmatpush1.msra.mxu0 %v788
        %827 = vmatprep.subr.mxu0 0.0
        %828 = vmatpush1.msra.mxu0 %v789
        %829 = vmatprep.subr.mxu0 0.0
        %830 = vmatpush1.msra.mxu0 0.0
        %831 = vmatprep.subr.mxu0 0.0
        %832 = vmatpush1.msra.mxu0 0.0
        %833 = vmatprep.subr.mxu0 0.0
        %834 = vmatpush1.msra.mxu0 0.0
        %835 = vmatprep.subr.mxu0 0.0
        %836 = vmatpush1.msra.mxu0 0.0
        %837 = vmatprep.subr.mxu0 0.0
        %838 = vmatpush1.msra.mxu0 0.0
        %839 = vmatprep.subr.mxu0 0.0
        %840 = vmatpush1.msra.mxu0 0.0
        %841 = vmatprep.subr.mxu0 0.0
        %842 = vmatpush1.msra.mxu0 0.0
        %843 = vmatprep.subr.mxu0 0.0
        %844 = vmatpush1.msra.mxu0 0.0
        %845 = vmatprep.subr.mxu0 0.0
        %846 = vmatpush1.msra.mxu0 0.0
        %847 = vmatprep.subr.mxu0 0.0
        %848 = vmatpush1.msra.mxu0 0.0
        %849 = vmatprep.subr.mxu0 0.0
        %850 = vmatpush1.msra.mxu0 0.0
        %851 = vmatprep.subr.mxu0 0.0
        %852 = vmatpush1.msra.mxu0 0.0
        %853 = vmatprep.subr.mxu0 0.0
        %854 = vmatpush1.msra.mxu0 0.0
        %855 = vmatprep.subr.mxu0 0.0
        %856 = vmatpush1.msra.mxu0 0.0
        %857 = vmatprep.subr.mxu0 0.0
        %858 = vmatpush1.msra.mxu0 0.0
        %859 = vmatprep.subr.mxu0 0.0
        %860 = vmatpush1.msra.mxu0 0.0
        %861 = vmatprep.mubr.f32.mxu0 0.0
        %862 = vmatmul.mubr.f32.gmra.mrb[0].mxu0 %v758
        %v863 = vpop.f32.mrb[0].mxu0
        %v864 = vadd.f32 %v795, %v863
        %v865 = vpop.f32.mrb[0].mxu0
        %866 = vmatprep.mubr.f32.mxu0 0.0
        %867 = vmatmul.mubr.f32.gmra.mrb[0].mxu0 %v759
        %v868 = vpop.f32.mrb[0].mxu0
        %v869 = vadd.f32 %v795, %v868
        %v870 = vpop.f32.mrb[0].mxu0
        %871 = vmatprep.mubr.f32.mxu0 0.0
        %872 = vmatmul.mubr.f32.gmra.mrb[0].mxu0 %v760
        %v873 = vpop.f32.mrb[0].mxu0
        %v874 = vadd.f32 %v795, %v873
        %v875 = vpop.f32.mrb[0].mxu0
        %876 = vmatprep.mubr.f32.mxu0 0.0
        %877 = vmatmul.mubr.f32.gmra.mrb[0].mxu0 %v761
        %v878 = vpop.f32.mrb[0].mxu0
        %v879 = vadd.f32 %v795, %v878
        %v880 = vpop.f32.mrb[0].mxu0
        %881 = vmatprep.mubr.f32.mxu0 0.0
        %882 = vmatmul.mubr.f32.gmra.mrb[0].mxu0 %v762
        %v883 = vpop.f32.mrb[0].mxu0
        %v884 = vadd.f32 %v795, %v883
        %v885 = vpop.f32.mrb[0].mxu0
        %886 = vmatprep.mubr.f32.mxu0 0.0
        %887 = vmatmul.mubr.f32.gmra.mrb[0].mxu0 %v763
        %v888 = vpop.f32.mrb[0].mxu0
        %v889 = vadd.f32 %v795, %v888
        %v890 = vpop.f32.mrb[0].mxu0
        %891 = vmatprep.mubr.f32.mxu0 0.0
        %892 = vmatmul.mubr.f32.gmra.mrb[0].mxu0 %v764
        %v893 = vpop.f32.mrb[0].mxu0
        %v894 = vadd.f32 %v795, %v893
        %v895 = vpop.f32.mrb[0].mxu0
        %896 = vmatprep.mubr.f32.mxu0 0.0
        %897 = vmatmul.mubr.f32.gmra.mrb[0].mxu0 %v765
        %v898 = vpop.f32.mrb[0].mxu0
        %v899 = vadd.f32 %v795, %v898
        %v900 = vpop.f32.mrb[0].mxu0
        %901 = vmatprep.mubr.f32.mxu0 0.0
        %902 = vmatmul.mubr.f32.gmra.mrb[0].mxu0 %v766
        %v903 = vpop.f32.mrb[0].mxu0
        %v904 = vadd.f32 %v795, %v903
        %v905 = vpop.f32.mrb[0].mxu0
        %906 = vmatprep.mubr.f32.mxu0 0.0
        %907 = vmatmul.mubr.f32.gmra.mrb[0].mxu0 %v767
        %v908 = vpop.f32.mrb[0].mxu0
        %v909 = vadd.f32 %v795, %v908
        %v910 = vpop.f32.mrb[0].mxu0
        %911 = vmatprep.mubr.f32.mxu0 0.0
        %912 = vmatmul.mubr.f32.gmra.mrb[0].mxu0 %v768
        %v913 = vpop.f32.mrb[0].mxu0
        %v914 = vadd.f32 %v795, %v913
        %v915 = vpop.f32.mrb[0].mxu0
        %916 = vmatprep.mubr.f32.mxu0 0.0
        %917 = vmatmul.mubr.f32.gmra.mrb[0].mxu0 %v769
        %v918 = vpop.f32.mrb[0].mxu0
        %v919 = vadd.f32 %v795, %v918
        %v920 = vpop.f32.mrb[0].mxu0
        %921 = vmatprep.mubr.f32.mxu0 0.0
        %922 = vmatmul.mubr.f32.gmra.mrb[0].mxu0 %v770
        %v923 = vpop.f32.mrb[0].mxu0
        %v924 = vadd.f32 %v795, %v923
        %v925 = vpop.f32.mrb[0].mxu0
        %926 = vmatprep.mubr.f32.mxu0 0.0
        %927 = vmatmul.mubr.f32.gmra.mrb[0].mxu0 %v771
        %v928 = vpop.f32.mrb[0].mxu0
        %v929 = vadd.f32 %v795, %v928
        %v930 = vpop.f32.mrb[0].mxu0
        %931 = vmatprep.mubr.f32.mxu0 0.0
        %932 = vmatmul.mubr.f32.gmra.mrb[0].mxu0 %v772
        %v933 = vpop.f32.mrb[0].mxu0
        %v934 = vadd.f32 %v795, %v933
        %v935 = vpop.f32.mrb[0].mxu0
        %936 = vmatprep.mubr.f32.mxu0 0.0
        %937 = vmatmul.mubr.f32.gmra.mrb[0].mxu0 %v773
        %v938 = vpop.f32.mrb[0].mxu0
        %v939 = vadd.f32 %v795, %v938
        %v940 = vpop.f32.mrb[0].mxu0
        %941 = vdwg.mxu0
        %v942 = vtanh.pop %v864
        %v943 = vtanh.pop %v869
        %v944 = vtanh.pop %v874
        %v945 = vtanh.pop %v879
        %v946 = vtanh.pop %v884
        %v947 = vtanh.pop %v889
        %v948 = vtanh.pop %v894
        %v949 = vtanh.pop %v899
        %v950 = vtanh.pop %v904
        %v951 = vtanh.pop %v909
        %v952 = vtanh.pop %v914
        %v953 = vtanh.pop %v919
        %v954 = vtanh.pop %v924
        %v955 = vtanh.pop %v929
        %v956 = vtanh.pop %v934
        %v957 = vtanh.pop %v939
        %v958 = vld [vmem:[%s7] sm:$0xff]
        %v959 = vld [vmem:[%s8] sm:$0xff]
        %961 = vset.pattern.permute.xlu0 0
        %962 = vperm.xlu0 %961, %v959
        %v963 = vpop.permute.xlu0 %962
        %965 = vmatprep.subr.mxu0 0.0
        %966 = vmatpush1.xpose.msra.mxu0 %v942
        %967 = vmatprep.subr.mxu0 0.0
        %968 = vmatpush1.xpose.msra.mxu0 %v943
        %969 = vmatprep.subr.mxu0 0.0
        %970 = vmatpush1.xpose.msra.mxu0 %v944
        %971 = vmatprep.subr.mxu0 0.0
        %972 = vmatpush1.xpose.msra.mxu0 %v945
        %973 = vmatprep.subr.mxu0 0.0
        %974 = vmatpush1.xpose.msra.mxu0 %v946
        %975 = vmatprep.subr.mxu0 0.0
        %976 = vmatpush1.xpose.msra.mxu0 %v947
        %977 = vmatprep.subr.mxu0 0.0
        %978 = vmatpush1.xpose.msra.mxu0 %v948
        %979 = vmatprep.subr.mxu0 0.0
        %980 = vmatpush1.xpose.msra.mxu0 %v949
        %981 = vmatprep.subr.mxu0 0.0
        %982 = vmatpush1.xpose.msra.mxu0 %v950
        %983 = vmatprep.subr.mxu0 0.0
        %984 = vmatpush1.xpose.msra.mxu0 %v951
        %985 = vmatprep.subr.mxu0 0.0
        %986 = vmatpush1.xpose.msra.mxu0 %v952
        %987 = vmatprep.subr.mxu0 0.0
        %988 = vmatpush1.xpose.msra.mxu0 %v953
        %989 = vmatprep.subr.mxu0 0.0
        %990 = vmatpush1.xpose.msra.mxu0 %v954
        %991 = vmatprep.subr.mxu0 0.0
        %992 = vmatpush1.xpose.msra.mxu0 %v955
        %993 = vmatprep.subr.mxu0 0.0
        %994 = vmatpush1.xpose.msra.mxu0 %v956
        %995 = vmatprep.subr.mxu0 0.0
        %996 = vmatpush1.xpose.msra.mxu0 %v957
        %997 = vmatprep.subr.mxu0 0.0
        %998 = vmatpush1.xpose.msra.mxu0 0.0
        %999 = vmatprep.subr.mxu0 0.0
        %1000 = vmatpush1.xpose.msra.mxu0 0.0
        %1001 = vmatprep.subr.mxu0 0.0
        %1002 = vmatpush1.xpose.msra.mxu0 0.0
        %1003 = vmatprep.subr.mxu0 0.0
        %1004 = vmatpush1.xpose.msra.mxu0 0.0
        %1005 = vmatprep.subr.mxu0 0.0
        %1006 = vmatpush1.xpose.msra.mxu0 0.0
        %1007 = vmatprep.subr.mxu0 0.0
        %1008 = vmatpush1.xpose.msra.mxu0 0.0
        %1009 = vmatprep.subr.mxu0 0.0
        %1010 = vmatpush1.xpose.msra.mxu0 0.0
        %1011 = vmatprep.subr.mxu0 0.0
        %1012 = vmatpush1.xpose.msra.mxu0 0.0
        %1013 = vmatprep.subr.mxu0 0.0
        %1014 = vmatpush1.xpose.msra.mxu0 0.0
        %1015 = vmatprep.subr.mxu0 0.0
        %1016 = vmatpush1.xpose.msra.mxu0 0.0
        %1017 = vmatprep.subr.mxu0 0.0
        %1018 = vmatpush1.xpose.msra.mxu0 0.0
        %1019 = vmatprep.subr.mxu0 0.0
        %1020 = vmatpush1.xpose.msra.mxu0 0.0
        %1021 = vmatprep.subr.mxu0 0.0
        %1022 = vmatpush1.xpose.msra.mxu0 0.0
        %1023 = vmatprep.subr.mxu0 0.0
        %1024 = vmatpush1.xpose.msra.mxu0 0.0
        %1025 = vmatprep.subr.mxu0 0.0
        %1026 = vmatpush1.xpose.msra.mxu0 0.0
        %1027 = vmatprep.subr.mxu0 0.0
        %1028 = vmatpush1.xpose.msra.mxu0 0.0
        %1029 = vmatprep.mubr.f32.mxu0 0.0
        %1030 = vmatmul.mubr.f32.gmra.mrb[0].mxu0 %v958
        %v1031 = vpop.f32.mrb[0].mxu0
        %v1032 = vadd.f32 %v963, %v1031
        %v1033 = vpop.f32.mrb[0].mxu0
        %1034 = vdwg.mxu0
        %1035 = vst [vmem:[%s326] sm:$0xff] %v1032
        %s1036 = sand.u32 %s225, 1
        %s1037 = scalar_lea.sflag [#allocation3], %s1036
        %s1038 = sand.u32 %s225, 1
        %s1039 = smul.addr %s1038, 8
        %s1040 = scalar_lea.vmem [#allocation2], %s1039
        // Predicated region
        $region57: #{tpu_custom_call.1} parent=55 // pred_check
          %p1041 = pneg %p235
        $region58: #{tpu_custom_call.1} parent=55 // pred_check_branch
          %1043 = sbr.rel (%p1041) target = $region60
        $region59: #{tpu_custom_call.1} parent=55 // pred_region
          %s1045 = ssub.s32 128, 128
          %1046 = vsyncadd %s1037, %s1045
          %s1047 = smul.addr %s23, 128
          %s1048 = scalar_lea.hbm %s9, %s1047
          %s1050 = sshll.u32 %s1040, 4
          %s1051 = int_to_ptr.vmem [resolvable:$true] %s1050
          %1053 = dma.vmem_to_hbm [thread:$0]  %s1051, 128, %s1048, %s1037
        $region60: #{tpu_custom_call.1} parent=55 // pred_fallthru
          _
      $region56: #{tpu_custom_call.1} parent=5 // pred_fallthru
        _
      %p1054 = scmp.le.s32.totalorder 2, %s18
      // Predicated region
      $region61: #{tpu_custom_call.1} parent=5 // pred_check
        %p1055 = pneg %p1054
      $region62: #{tpu_custom_call.1} parent=5 // pred_check_branch
        %1057 = sbr.rel (%p1055) target = $region64
      $region63: #{tpu_custom_call.1} parent=5 // pred_region
        %s1058 = ssub.s32 %s18, 2
        // Predicated region
        $region65: #{tpu_custom_call.1} parent=63 // pred_check
          %p1059 = pneg %p241
        $region66: #{tpu_custom_call.1} parent=63 // pred_check_branch
          %1061 = sbr.rel (%p1059) target = $region68
        $region67: #{tpu_custom_call.1} parent=63 // pred_region
          %s1062 = sand.u32 %s226, 1
          %s1063 = scalar_lea.sflag [#allocation3], %s1062
          %s1064 = sand.u32 %s226, 1
          %s1065 = smul.addr %s1064, 8
          %s1066 = scalar_lea.vmem [#allocation2], %s1065
          %1067 = dma.done %s1063, 128
        $region68: #{tpu_custom_call.1} parent=63 // pred_fallthru
          _
      $region64: #{tpu_custom_call.1} parent=5 // pred_fallthru
        _
    $region6: #{tpu_custom_call.1} parent=1 // loop_footer
      %s22 = sadd.s32 1, %s18
    $region7: #{tpu_custom_call.1} parent=1 // loop_footer_branch
      %17 = sbr.rel target = $region3
    $region8: #{tpu_custom_call.1} parent=1 // loop_exit
      _
    %1068 = vsyncpa [#allocation3], 1
    %s1069 = scalar_lea.sflag [#allocation3], 1
    %1070 = vsyncpa %s1069, 1

</llo_original>
